<compile_context>
chip_gen: v5e
topology: v5e:2x2
jax: 0.10.0
libtpu: 0.0.40
codegen_flags: <defaults>
</compile_context>

<pallas_src>
import jax
import jax.numpy as jnp
from jax.experimental import pallas as pl
from jax.experimental.pallas import tpu as pltpu


def _round_up(x, m):
    return ((x + m - 1) // m) * m


# ----------------------------- Pallas kernel --------------------------------
def _make_control_mlp_kernel(num_linear, action_dim, use_vpu_action):
    """Build the fused MLP kernel for a fixed number of linear layers.

    Ref order: enc, act, w1_enc, w1_act, w2..wL, b1..bL, out
    Weights are (in, out) so x @ W + b == torch's x @ W.T + b.
    """
    L = num_linear

    def kernel(*refs):
        enc_ref, act_ref = refs[0], refs[1]
        w_refs = refs[2:2 + (L + 1)]
        b_refs = refs[2 + (L + 1):2 + (L + 1) + L]
        out_ref = refs[-1]

        # ---- layer 1: concat-free  cat([enc, act], 1) @ W1 + b1 ------------
        h = jnp.dot(enc_ref[...], w_refs[0][...],
                    preferred_element_type=jnp.float32)
        if use_vpu_action:
            # K == action_dim is tiny (e.g. 4): a second MXU pass costs a full
            # pipeline fill+drain for no arithmetic benefit.  Do it as
            # broadcast-FMAs on the (otherwise idle) VPU, in f32 so it also
            # works on v5e (no bf16 VPU).
            act_f = act_ref[...].astype(jnp.float32)
            w1a_f = w_refs[1][...].astype(jnp.float32)
            for k in range(action_dim):
                h = h + act_f[:, k:k + 1] * w1a_f[k:k + 1, :]
        else:
            h = h + jnp.dot(act_ref[...], w_refs[1][...],
                            preferred_element_type=jnp.float32)
        h = h + b_refs[0][...]                 # f32 bias add
        if L > 1:
            h = jnp.tanh(h)                    # f32 tanh (EUP)

        # ---- layers 2..L (tanh on all but the last; last is Identity) ------
        for j in range(1, L):
            w = w_refs[j + 1][...]
            h = (jnp.dot(h.astype(w.dtype), w,
                         preferred_element_type=jnp.float32)
                 + b_refs[j][...])
            if j < L - 1:
                h = jnp.tanh(h)

        out_ref[...] = h.astype(out_ref.dtype)

    return kernel


# ------------------------------ Host wrapper ---------------------------------
def control_model_forward(encoding, action, params, *, batch_tile=None,
                          compute_dtype=jnp.bfloat16):
    """params = ((w1, b1), ..., (wL, bL)); weights (in, out), biases (1, out)."""
    B, F = encoding.shape
    A = action.shape[1]
    L = len(params)
    out_dim = params[-1][0].shape[1]

    # ---- parameter prep (tiny; amortized under jit) --------------------------
    w1 = params[0][0]
    weights = [w1[:F, :], w1[F:, :]] + [w for (w, _) in params[1:]]
    weights = [w.astype(compute_dtype) for w in weights]
    biases = [b.reshape(1, -1).astype(jnp.float32) for (_, b) in params]

    # bf16 activations halve the kernel's HBM read traffic (ideally the
    # producer already emits compute_dtype so this cast is a no-op).
    enc = encoding.astype(compute_dtype)
    act = action.astype(compute_dtype)

    # ---- batch tiling: huge tiles, no host pad, no output slice --------------
    if batch_tile is None:
        if B <= 1024:
            batch_tile = B                       # single full-array tile
        else:
            # big tiles amortize ~0.35us/grid-step; >=2 steps so v7x's two TCs
            # both get work via the "parallel" axis.
            batch_tile = min(4096, _round_up(pl.cdiv(B, 2), 8))
    if batch_tile >= B:
        batch_tile = B                           # full array: no alignment needed
    else:
        batch_tile = _round_up(batch_tile, 8)    # sublane-aligned partial blocks
        if batch_tile >= B:
            batch_tile = B
    grid = (pl.cdiv(B, batch_tile),)             # ragged last block masked by Pallas

    def batch_spec(width):
        return pl.BlockSpec((batch_tile, width), lambda i: (i, 0))

    def resident_spec(arr):
        # Full array, constant block index: DMA'd once, VMEM-resident across tiles.
        return pl.BlockSpec(arr.shape, lambda i: (0, 0))

    in_specs = ([batch_spec(F), batch_spec(A)]
                + [resident_spec(w) for w in weights]
                + [resident_spec(b) for b in biases])

    # Conservative VMEM estimate; only raise the scoped limit when needed
    # (v5e defaults to 16 MiB scoped VMEM).
    in_item = jnp.dtype(compute_dtype).itemsize
    max_width = max(out_dim, max(int(w.shape[1]) for w in weights))
    est = 2 * batch_tile * ((F + A) * in_item + out_dim * 4)          # dbl-buffered I/O
    est += sum(2 * int(w.size) * in_item for w in weights)
    est += sum(int(b.size) * 4 for b in biases)
    est += 4 * batch_tile * max_width * 4                             # intermediates
    cp_kwargs = dict(dimension_semantics=("parallel",))
    if est > 12 * 1024 * 1024:
        cp_kwargs["vmem_limit_bytes"] = int(min(2 * est, 64 * 1024 * 1024))

    kernel = _make_control_mlp_kernel(L, A, use_vpu_action=(A <= 8))

    out = pl.pallas_call(
        kernel,
        out_shape=jax.ShapeDtypeStruct((B, out_dim), jnp.float32),
        grid=grid,
        in_specs=in_specs,
        out_specs=batch_spec(out_dim),
        compiler_params=pltpu.CompilerParams(**cp_kwargs),
    )(enc, act, *weights, *biases)

    return out


def init_control_model_params(key, feature_dim, action_dim, hidden_dim, num_layers):
    """Deterministic init matching the module's layer sizes.

    sizes = [feature_dim + action_dim, hidden_dim, ..., hidden_dim, feature_dim]
            (num_layers - 1 hidden entries)
    """
    sizes = ([feature_dim + action_dim]
             + [hidden_dim] * (num_layers - 1)
             + [feature_dim])
    params = []
    for j in range(len(sizes) - 1):
        key, kw, kb = jax.random.split(key, 3)
        fan_in, fan_out = sizes[j], sizes[j + 1]
        bound = 1.0 / jnp.sqrt(fan_in)   # same scale as torch nn.Linear default
        # stored as (in, out) == torch weight (out, in) transposed
        w = jax.random.uniform(kw, (fan_in, fan_out), jnp.float32, -bound, bound)
        b = jax.random.uniform(kb, (1, fan_out), jnp.float32, -bound, bound)
        params.append((w, b))
    return tuple(params)


# Pure-JAX reference.  With compute_dtype it mirrors the kernel's precision
# handling (cast operands for the matmuls, accumulate/bias/tanh in f32).
def control_model_ref(encoding, action, params, compute_dtype=jnp.float32):
    x = jnp.concatenate([encoding, action], axis=1)
    n = len(params)
    for j, (w, b) in enumerate(params):
        x = (jnp.dot(x.astype(compute_dtype), w.astype(compute_dtype),
                     preferred_element_type=jnp.float32)
             + b.reshape(1, -1).astype(jnp.float32))
        if j < n - 1:
            x = jnp.tanh(x)
    return x


if __name__ == "__main__":
    # Small, forward-consistent shapes.
    batch = 2
    feature_dim = 32
    action_dim = 4          # action_shape = (4,)
    hidden_dim = 32
    num_layers = 3

    key = jax.random.PRNGKey(0)
    k_enc, k_act, k_par = jax.random.split(key, 3)

    encoding = jax.random.normal(k_enc, (batch, feature_dim), jnp.float32)
    action = jax.random.normal(k_act, (batch, action_dim), jnp.float32)
    params = init_control_model_params(k_par, feature_dim, action_dim,
                                       hidden_dim, num_layers)

    out = control_model_forward(encoding, action, params)
    out = jax.block_until_ready(out)
    assert out.shape == (batch, feature_dim), out.shape

    # Tight check against a reference that mirrors the kernel's bf16/f32 handling.
    ref_mirror = control_model_ref(encoding, action, params,
                                   compute_dtype=jnp.bfloat16)
    assert jnp.allclose(out, ref_mirror, atol=5e-3, rtol=5e-3), \
        "mismatch vs bf16-mirrored JAX reference"

    # Loose check against the full-f32 semantics of the original module.
    ref_f32 = control_model_ref(encoding, action, params,
                                compute_dtype=jnp.float32)
    assert jnp.allclose(out, ref_f32, atol=5e-2, rtol=5e-2), \
        "mismatch vs f32 JAX reference"

    print("KERNEL_OK")
</pallas_src>

<mosaic_0001>
module attributes {stable_mosaic.version = 11 : i64} {
  func.func @kernel(%arg0: i32, %arg1: memref<2x32xbf16, #tpu.memory_space<vmem>>, %arg2: memref<2x4xbf16, #tpu.memory_space<vmem>>, %arg3: memref<32x32xbf16, #tpu.memory_space<vmem>>, %arg4: memref<4x32xbf16, #tpu.memory_space<vmem>>, %arg5: memref<32x32xbf16, #tpu.memory_space<vmem>>, %arg6: memref<32x32xbf16, #tpu.memory_space<vmem>>, %arg7: memref<1x32xf32, #tpu.memory_space<vmem>>, %arg8: memref<1x32xf32, #tpu.memory_space<vmem>>, %arg9: memref<1x32xf32, #tpu.memory_space<vmem>>, %arg10: memref<2x32xf32, #tpu.memory_space<vmem>>) attributes {dimension_semantics = [#tpu.dimension_semantics<parallel>], iteration_bounds = array<i64: 1>, scalar_prefetch = 0 : i64, scratch_operands = 0 : i64, tpu.core_type = #tpu.core_type<tc>, window_params = [{transform_indices = @transform_0, window_bounds = array<i64: 2, 32>}, {transform_indices = @transform_1, window_bounds = array<i64: 2, 4>}, {pipeline_mode = #tpu.pipeline_mode<synchronous>, transform_indices = @transform_2, window_bounds = array<i64: 32, 32>}, {pipeline_mode = #tpu.pipeline_mode<synchronous>, transform_indices = @transform_3, window_bounds = array<i64: 4, 32>}, {pipeline_mode = #tpu.pipeline_mode<synchronous>, transform_indices = @transform_4, window_bounds = array<i64: 32, 32>}, {pipeline_mode = #tpu.pipeline_mode<synchronous>, transform_indices = @transform_5, window_bounds = array<i64: 32, 32>}, {pipeline_mode = #tpu.pipeline_mode<synchronous>, transform_indices = @transform_6, window_bounds = array<i64: 1, 32>}, {pipeline_mode = #tpu.pipeline_mode<synchronous>, transform_indices = @transform_7, window_bounds = array<i64: 1, 32>}, {pipeline_mode = #tpu.pipeline_mode<synchronous>, transform_indices = @transform_8, window_bounds = array<i64: 1, 32>}, {transform_indices = @transform_9, window_bounds = array<i64: 2, 32>}]} {
    %c0 = arith.constant 0 : index
    %c0_0 = arith.constant 0 : index
    %0 = vector.load %arg1[%c0, %c0_0] : memref<2x32xbf16, #tpu.memory_space<vmem>>, vector<2x32xbf16>
    %c0_1 = arith.constant 0 : index
    %c0_2 = arith.constant 0 : index
    %1 = vector.load %arg3[%c0_1, %c0_2] : memref<32x32xbf16, #tpu.memory_space<vmem>>, vector<32x32xbf16>
    %cst = arith.constant dense<0.000000e+00> : vector<2x32xf32>
    %2 = tpu.matmul %0, %1, %cst {dimension_numbers = #tpu.dot_dimension_numbers<[1], [0], [0], [1], [0, 0, 1, 1], [], []>} : vector<2x32xbf16>, vector<32x32xbf16>, vector<2x32xf32> -> vector<2x32xf32>
    %c0_3 = arith.constant 0 : index
    %c0_4 = arith.constant 0 : index
    %3 = vector.load %arg2[%c0_3, %c0_4] : memref<2x4xbf16, #tpu.memory_space<vmem>>, vector<2x4xbf16>
    %4 = arith.extf %3 : vector<2x4xbf16> to vector<2x4xf32>
    %c0_5 = arith.constant 0 : index
    %c0_6 = arith.constant 0 : index
    %5 = vector.load %arg4[%c0_5, %c0_6] : memref<4x32xbf16, #tpu.memory_space<vmem>>, vector<4x32xbf16>
    %6 = arith.extf %5 : vector<4x32xbf16> to vector<4x32xf32>
    %7 = vector.extract_strided_slice %4 {offsets = [0, 0], sizes = [2, 1], strides = [1, 1]} : vector<2x4xf32> to vector<2x1xf32>
    %8 = vector.extract_strided_slice %6 {offsets = [0, 0], sizes = [1, 32], strides = [1, 1]} : vector<4x32xf32> to vector<1x32xf32>
    %9 = vector.broadcast %7 : vector<2x1xf32> to vector<2x32xf32>
    %10 = vector.broadcast %8 : vector<1x32xf32> to vector<2x32xf32>
    %11 = arith.mulf %9, %10 : vector<2x32xf32>
    %12 = arith.addf %2, %11 : vector<2x32xf32>
    %13 = vector.extract_strided_slice %4 {offsets = [0, 1], sizes = [2, 1], strides = [1, 1]} : vector<2x4xf32> to vector<2x1xf32>
    %14 = vector.extract_strided_slice %6 {offsets = [1, 0], sizes = [1, 32], strides = [1, 1]} : vector<4x32xf32> to vector<1x32xf32>
    %15 = vector.broadcast %13 : vector<2x1xf32> to vector<2x32xf32>
    %16 = vector.broadcast %14 : vector<1x32xf32> to vector<2x32xf32>
    %17 = arith.mulf %15, %16 : vector<2x32xf32>
    %18 = arith.addf %12, %17 : vector<2x32xf32>
    %19 = vector.extract_strided_slice %4 {offsets = [0, 2], sizes = [2, 1], strides = [1, 1]} : vector<2x4xf32> to vector<2x1xf32>
    %20 = vector.extract_strided_slice %6 {offsets = [2, 0], sizes = [1, 32], strides = [1, 1]} : vector<4x32xf32> to vector<1x32xf32>
    %21 = vector.broadcast %19 : vector<2x1xf32> to vector<2x32xf32>
    %22 = vector.broadcast %20 : vector<1x32xf32> to vector<2x32xf32>
    %23 = arith.mulf %21, %22 : vector<2x32xf32>
    %24 = arith.addf %18, %23 : vector<2x32xf32>
    %25 = vector.extract_strided_slice %4 {offsets = [0, 3], sizes = [2, 1], strides = [1, 1]} : vector<2x4xf32> to vector<2x1xf32>
    %26 = vector.extract_strided_slice %6 {offsets = [3, 0], sizes = [1, 32], strides = [1, 1]} : vector<4x32xf32> to vector<1x32xf32>
    %27 = vector.broadcast %25 : vector<2x1xf32> to vector<2x32xf32>
    %28 = vector.broadcast %26 : vector<1x32xf32> to vector<2x32xf32>
    %29 = arith.mulf %27, %28 : vector<2x32xf32>
    %30 = arith.addf %24, %29 : vector<2x32xf32>
    %c0_7 = arith.constant 0 : index
    %c0_8 = arith.constant 0 : index
    %31 = vector.load %arg7[%c0_7, %c0_8] : memref<1x32xf32, #tpu.memory_space<vmem>>, vector<1x32xf32>
    %32 = vector.broadcast %31 : vector<1x32xf32> to vector<2x32xf32>
    %33 = arith.addf %30, %32 : vector<2x32xf32>
    %34 = math.tanh %33 : vector<2x32xf32>
    %c0_9 = arith.constant 0 : index
    %c0_10 = arith.constant 0 : index
    %35 = vector.load %arg5[%c0_9, %c0_10] : memref<32x32xbf16, #tpu.memory_space<vmem>>, vector<32x32xbf16>
    %36 = arith.truncf %34 : vector<2x32xf32> to vector<2x32xbf16>
    %cst_11 = arith.constant dense<0.000000e+00> : vector<2x32xf32>
    %37 = tpu.matmul %36, %35, %cst_11 {dimension_numbers = #tpu.dot_dimension_numbers<[1], [0], [0], [1], [0, 0, 1, 1], [], []>} : vector<2x32xbf16>, vector<32x32xbf16>, vector<2x32xf32> -> vector<2x32xf32>
    %c0_12 = arith.constant 0 : index
    %c0_13 = arith.constant 0 : index
    %38 = vector.load %arg8[%c0_12, %c0_13] : memref<1x32xf32, #tpu.memory_space<vmem>>, vector<1x32xf32>
    %39 = vector.broadcast %38 : vector<1x32xf32> to vector<2x32xf32>
    %40 = arith.addf %37, %39 : vector<2x32xf32>
    %41 = math.tanh %40 : vector<2x32xf32>
    %c0_14 = arith.constant 0 : index
    %c0_15 = arith.constant 0 : index
    %42 = vector.load %arg6[%c0_14, %c0_15] : memref<32x32xbf16, #tpu.memory_space<vmem>>, vector<32x32xbf16>
    %43 = arith.truncf %41 : vector<2x32xf32> to vector<2x32xbf16>
    %cst_16 = arith.constant dense<0.000000e+00> : vector<2x32xf32>
    %44 = tpu.matmul %43, %42, %cst_16 {dimension_numbers = #tpu.dot_dimension_numbers<[1], [0], [0], [1], [0, 0, 1, 1], [], []>} : vector<2x32xbf16>, vector<32x32xbf16>, vector<2x32xf32> -> vector<2x32xf32>
    %c0_17 = arith.constant 0 : index
    %c0_18 = arith.constant 0 : index
    %45 = vector.load %arg9[%c0_17, %c0_18] : memref<1x32xf32, #tpu.memory_space<vmem>>, vector<1x32xf32>
    %46 = vector.broadcast %45 : vector<1x32xf32> to vector<2x32xf32>
    %47 = arith.addf %44, %46 : vector<2x32xf32>
    %c0_19 = arith.constant 0 : index
    %c0_20 = arith.constant 0 : index
    %48 = vector.load %arg10[%c0_19, %c0_20] : memref<2x32xf32, #tpu.memory_space<vmem>>, vector<2x32xf32>
    tpu.vector_store %arg10[%c0_19, %c0_20], %47 {strides = array<i32>} : memref<2x32xf32, #tpu.memory_space<vmem>>, vector<2x32xf32>,
    return
  }
  func.func @transform_0(%arg0: i32) -> (i32, i32) {
    %c0_i32 = arith.constant 0 : i32
    %c0_i32_0 = arith.constant 0 : i32
    return %arg0, %c0_i32 : i32, i32
  }
  func.func @transform_1(%arg0: i32) -> (i32, i32) {
    %c0_i32 = arith.constant 0 : i32
    %c0_i32_0 = arith.constant 0 : i32
    return %arg0, %c0_i32 : i32, i32
  }
  func.func @transform_2(%arg0: i32) -> (i32, i32) {
    %c0_i32 = arith.constant 0 : i32
    %c0_i32_0 = arith.constant 0 : i32
    %c0_i32_1 = arith.constant 0 : i32
    return %c0_i32, %c0_i32_0 : i32, i32
  }
  func.func @transform_3(%arg0: i32) -> (i32, i32) {
    %c0_i32 = arith.constant 0 : i32
    %c0_i32_0 = arith.constant 0 : i32
    %c0_i32_1 = arith.constant 0 : i32
    return %c0_i32, %c0_i32_0 : i32, i32
  }
  func.func @transform_4(%arg0: i32) -> (i32, i32) {
    %c0_i32 = arith.constant 0 : i32
    %c0_i32_0 = arith.constant 0 : i32
    %c0_i32_1 = arith.constant 0 : i32
    return %c0_i32, %c0_i32_0 : i32, i32
  }
  func.func @transform_5(%arg0: i32) -> (i32, i32) {
    %c0_i32 = arith.constant 0 : i32
    %c0_i32_0 = arith.constant 0 : i32
    %c0_i32_1 = arith.constant 0 : i32
    return %c0_i32, %c0_i32_0 : i32, i32
  }
  func.func @transform_6(%arg0: i32) -> (i32, i32) {
    %c0_i32 = arith.constant 0 : i32
    %c0_i32_0 = arith.constant 0 : i32
    %c0_i32_1 = arith.constant 0 : i32
    return %c0_i32, %c0_i32_0 : i32, i32
  }
  func.func @transform_7(%arg0: i32) -> (i32, i32) {
    %c0_i32 = arith.constant 0 : i32
    %c0_i32_0 = arith.constant 0 : i32
    %c0_i32_1 = arith.constant 0 : i32
    return %c0_i32, %c0_i32_0 : i32, i32
  }
  func.func @transform_8(%arg0: i32) -> (i32, i32) {
    %c0_i32 = arith.constant 0 : i32
    %c0_i32_0 = arith.constant 0 : i32
    %c0_i32_1 = arith.constant 0 : i32
    return %c0_i32, %c0_i32_0 : i32, i32
  }
  func.func @transform_9(%arg0: i32) -> (i32, i32) {
    %c0_i32 = arith.constant 0 : i32
    %c0_i32_0 = arith.constant 0 : i32
    return %arg0, %c0_i32 : i32, i32
  }
}

</mosaic_0001>

<llo_original>
// kernel: tpu_custom_call.1
$region0: #{tpu_custom_call.1}
  #allocation0 [shape = 'u32[]', space=smem, size = 0x4, offset = 0x4, fixed_abs, tag = 'smem constant byte address 0x4 - core index']
  #allocation1 [shape = 'u32[72,128]{1,0:T(1,128)}', space=vmem, size = 0x9000, scoped, tag = 'internal scratch']
  %s0 = inlined_call_operand.hbm [shape: bf16[2,32], index: 0, kind: input, shape index: {}]
  %s1 = inlined_call_operand.hbm [shape: bf16[2,4], index: 1, kind: input, shape index: {}]
  %s2 = inlined_call_operand.hbm [shape: bf16[32,32], index: 2, kind: input, shape index: {}]
  %s3 = inlined_call_operand.vmem [shape: bf16[4,32], index: 3, kind: input, shape index: {}]
  %s4 = inlined_call_operand.hbm [shape: bf16[32,32], index: 4, kind: input, shape index: {}]
  %s5 = inlined_call_operand.hbm [shape: bf16[32,32], index: 5, kind: input, shape index: {}]
  %s6 = inlined_call_operand.vmem [shape: f32[1,32], index: 6, kind: input, shape index: {}]
  %s7 = inlined_call_operand.vmem [shape: f32[1,32], index: 7, kind: input, shape index: {}]
  %s8 = inlined_call_operand.vmem [shape: f32[1,32], index: 8, kind: input, shape index: {}]
  %s9 = inlined_call_operand.hbm [shape: f32[2,32], index: 9, kind: output, shape index: {}]
  %s10 = sld [smem:[#allocation0]]
  $region66: #{tpu_custom_call.1} parent=0
    _
  %s12 = ssub.s32 1, %s10
  %s13 = scalar_select 0, %s12, %s10
  $region1: #{tpu_custom_call.1} parent=0
    #allocation2 [shape = 'u8[512]{0}', space=vmem, size = 0x400, scoped, tag = 'input window, operand 0, single buffered']
    #allocation3 [shape = 's32[1]{0}', space=sflag, size = 0x4, scoped, tag = 'scoped memory for tpu_custom_call.1']
    #allocation4 [shape = 's32[1]{0}', space=sflag, size = 0x4, scoped, tag = 'scoped memory for tpu_custom_call.1']
    #allocation5 [shape = 'u8[512]{0}', space=vmem, size = 0x400, scoped, tag = 'input window, operand 1, single buffered']
    #allocation6 [shape = 's32[1]{0}', space=sflag, size = 0x4, scoped, tag = 'scoped memory for tpu_custom_call.1']
    #allocation7 [shape = 'u8[8192]{0}', space=vmem, size = 0x2000, scoped, tag = 'input window, operand 2, single buffered']
    #allocation8 [shape = 'u8[8192]{0}', space=vmem, size = 0x2000, scoped, tag = 'input window, operand 4, single buffered']
    #allocation9 [shape = 's32[1]{0}', space=sflag, size = 0x4, scoped, tag = 'scoped memory for tpu_custom_call.1']
    #allocation10 [shape = 'u8[8192]{0}', space=vmem, size = 0x2000, scoped, tag = 'input window, operand 5, single buffered']
    #allocation11 [shape = 'u8[1024]{0}', space=vmem, size = 0x400, scoped, tag = 'output window, operand 0, single buffered']
    %14 = vsyncpa [#allocation3], 0
    %15 = vsyncpa [#allocation6], 0
    %16 = vsyncpa [#allocation9], 0
    %17 = vsyncpa [#allocation4], 0
    // Predicated region
    $region2: #{tpu_custom_call.1} parent=1 // pred_check
      _
    $region3: #{tpu_custom_call.1} parent=1 // pred_check_branch
      %19 = sbr.rel (0) target = $region5
    $region4: #{tpu_custom_call.1} parent=1 // pred_region
      %21 = vsyncadd [#allocation3], 0
      %s23 = sshll.u32 %s0, 4
      %s24 = int_to_ptr.hbm [resolvable:$true] %s23
      %s25 = sshll.u32 [#allocation2], 4
      %s26 = int_to_ptr.vmem [resolvable:$true] %s25
      %28 = dma.hbm_to_vmem [thread:$0]  %s24, 16, %s26, [#allocation3]
    $region5: #{tpu_custom_call.1} parent=1 // pred_fallthru
      _
    // Predicated region
    $region6: #{tpu_custom_call.1} parent=1 // pred_check
      _
    $region7: #{tpu_custom_call.1} parent=1 // pred_check_branch
      %30 = sbr.rel (0) target = $region9
    $region8: #{tpu_custom_call.1} parent=1 // pred_region
      %32 = vsyncadd [#allocation6], 0
      %s34 = sshll.u32 %s1, 4
      %s35 = int_to_ptr.hbm [resolvable:$true] %s34
      %s36 = sshll.u32 [#allocation5], 4
      %s37 = int_to_ptr.vmem [resolvable:$true] %s36
      %39 = dma.hbm_to_vmem [thread:$0]  %s35, 16, %s37, [#allocation6]
    $region9: #{tpu_custom_call.1} parent=1 // pred_fallthru
      _
    // Predicated region
    $region10: #{tpu_custom_call.1} parent=1 // pred_check
      _
    $region11: #{tpu_custom_call.1} parent=1 // pred_check_branch
      %41 = sbr.rel (0) target = $region13
    $region12: #{tpu_custom_call.1} parent=1 // pred_region
      %43 = vsyncadd [#allocation6], 0
      %s44 = sshll.u32 %s2, 4
      %s45 = int_to_ptr.hbm [resolvable:$true] %s44
      %s46 = sshll.u32 [#allocation7], 4
      %s47 = int_to_ptr.vmem [resolvable:$true] %s46
      %52 = dma.hbm_to_vmem [thread:$0]  %s45, 256, %s47, [#allocation6], 64, 64, 4
    $region13: #{tpu_custom_call.1} parent=1 // pred_fallthru
      _
    // Predicated region
    $region14: #{tpu_custom_call.1} parent=1 // pred_check
      _
    $region15: #{tpu_custom_call.1} parent=1 // pred_check_branch
      %54 = sbr.rel (0) target = $region17
    $region16: #{tpu_custom_call.1} parent=1 // pred_region
      _
    $region17: #{tpu_custom_call.1} parent=1 // pred_fallthru
      _
    // Predicated region
    $region18: #{tpu_custom_call.1} parent=1 // pred_check
      _
    $region19: #{tpu_custom_call.1} parent=1 // pred_check_branch
      %56 = sbr.rel (0) target = $region21
    $region20: #{tpu_custom_call.1} parent=1 // pred_region
      %58 = vsyncadd [#allocation9], 0
      %s59 = sshll.u32 %s4, 4
      %s60 = int_to_ptr.hbm [resolvable:$true] %s59
      %s61 = sshll.u32 [#allocation8], 4
      %s62 = int_to_ptr.vmem [resolvable:$true] %s61
      %67 = dma.hbm_to_vmem [thread:$0]  %s60, 256, %s62, [#allocation9], 64, 64, 4
    $region21: #{tpu_custom_call.1} parent=1 // pred_fallthru
      _
    // Predicated region
    $region22: #{tpu_custom_call.1} parent=1 // pred_check
      _
    $region23: #{tpu_custom_call.1} parent=1 // pred_check_branch
      %69 = sbr.rel (0) target = $region25
    $region24: #{tpu_custom_call.1} parent=1 // pred_region
      %71 = vsyncadd [#allocation9], 0
      %s72 = sshll.u32 %s5, 4
      %s73 = int_to_ptr.hbm [resolvable:$true] %s72
      %s74 = sshll.u32 [#allocation10], 4
      %s75 = int_to_ptr.vmem [resolvable:$true] %s74
      %80 = dma.hbm_to_vmem [thread:$0]  %s73, 256, %s75, [#allocation9], 64, 64, 4
    $region25: #{tpu_custom_call.1} parent=1 // pred_fallthru
      _
    // Predicated region
    $region26: #{tpu_custom_call.1} parent=1 // pred_check
      _
    $region27: #{tpu_custom_call.1} parent=1 // pred_check_branch
      %82 = sbr.rel (0) target = $region29
    $region28: #{tpu_custom_call.1} parent=1 // pred_region
      _
    $region29: #{tpu_custom_call.1} parent=1 // pred_fallthru
      _
    // Predicated region
    $region30: #{tpu_custom_call.1} parent=1 // pred_check
      _
    $region31: #{tpu_custom_call.1} parent=1 // pred_check_branch
      %84 = sbr.rel (0) target = $region33
    $region32: #{tpu_custom_call.1} parent=1 // pred_region
      _
    $region33: #{tpu_custom_call.1} parent=1 // pred_fallthru
      _
    // Predicated region
    $region34: #{tpu_custom_call.1} parent=1 // pred_check
      _
    $region35: #{tpu_custom_call.1} parent=1 // pred_check_branch
      %86 = sbr.rel (0) target = $region37
    $region36: #{tpu_custom_call.1} parent=1 // pred_region
      _
    $region37: #{tpu_custom_call.1} parent=1 // pred_fallthru
      _
    // Predicated region
    $region38: #{tpu_custom_call.1} parent=1 // pred_check
      _
    $region39: #{tpu_custom_call.1} parent=1 // pred_check_branch
      %88 = sbr.rel (0) target = $region41
    $region40: #{tpu_custom_call.1} parent=1 // pred_region
      %90 = dma.done [#allocation3], 16
    $region41: #{tpu_custom_call.1} parent=1 // pred_fallthru
      _
    // Predicated region
    $region42: #{tpu_custom_call.1} parent=1 // pred_check
      _
    $region43: #{tpu_custom_call.1} parent=1 // pred_check_branch
      %92 = sbr.rel (0) target = $region45
    $region44: #{tpu_custom_call.1} parent=1 // pred_region
      %94 = dma.done [#allocation6], 16
    $region45: #{tpu_custom_call.1} parent=1 // pred_fallthru
      _
    // Predicated region
    $region46: #{tpu_custom_call.1} parent=1 // pred_check
      _
    $region47: #{tpu_custom_call.1} parent=1 // pred_check_branch
      %96 = sbr.rel (0) target = $region49
    $region48: #{tpu_custom_call.1} parent=1 // pred_region
      %98 = dma.done [#allocation6], 256
    $region49: #{tpu_custom_call.1} parent=1 // pred_fallthru
      _
    // Predicated region
    $region50: #{tpu_custom_call.1} parent=1 // pred_check
      _
    $region51: #{tpu_custom_call.1} parent=1 // pred_check_branch
      %100 = sbr.rel (0) target = $region53
    $region52: #{tpu_custom_call.1} parent=1 // pred_region
      %102 = dma.done [#allocation9], 256
    $region53: #{tpu_custom_call.1} parent=1 // pred_fallthru
      _
    // Predicated region
    $region54: #{tpu_custom_call.1} parent=1 // pred_check
      _
    $region55: #{tpu_custom_call.1} parent=1 // pred_check_branch
      %104 = sbr.rel (0) target = $region57
    $region56: #{tpu_custom_call.1} parent=1 // pred_region
      %106 = dma.done [#allocation9], 256
    $region57: #{tpu_custom_call.1} parent=1 // pred_fallthru
      _
    %v108 = vld [vmem:[#allocation2] sm:$0x1]
    %v109 = vld [vmem:[#allocation7] sm:$0xf]
    %v110 = vld [vmem:[#allocation7 + $0x4] sm:$0xf]
    %v111 = vld [vmem:[#allocation7 + $0x8] sm:$0xf]
    %v112 = vld [vmem:[#allocation7 + $0xc] sm:$0xf]
    %v113 = vld [vmem:[#allocation5] sm:$0x1]
    %v114 = vunpack.c.l.bf16 %v113
    %v115 = vld [vmem:[%s3] sm:$0x3]
    %v116 = vunpack.c.l.bf16 %v115
    %118 = vset.pattern.permute.xlu0 0
    %119 = vperm.xlu0 %118, %v114
    %v120 = vpop.permute.xlu0 %119
    %v123 = vunpack.c.l.s4 269488144
    %v124 = vunpack.c.0.s8 %v123
    %v125 = vperm.slane %v120, %v124
    %v126 = vperm.slane %v116, 0
    %v127 = vmul.f32 %v125, %v126
    %v132 = vunpack.c.l.b16 %v109
    %v133 = vunpack.c.l.b16 %v110
    %v134 = vunpack.c.l.b16 %v111
    %v135 = vunpack.c.l.b16 %v112
    %v136 = vpack.c.b16 %v133, %v132
    %v137 = vpack.c.b16 %v135, %v134
    %vm140 = vcmask 261120
    %v142 = vsel %vm140, %v108, 0
    %144 = vmatpush.bf16.msra.mxu0 0
    %145 = vmatpush.bf16.msra.mxu0 0
    %146 = vmatpush.bf16.msra.mxu0 0
    %147 = vmatpush.bf16.msra.mxu0 0
    %148 = vmatpush.bf16.msra.mxu0 0
    %149 = vmatpush.bf16.msra.mxu0 0
    %150 = vmatpush.bf16.msra.mxu0 %v137
    %151 = vmatpush.bf16.msra.mxu0 %v136
    %152 = vmatmul.bf16.gmra.mxu0 %v142
    %v153 = vpop.f32.mrf.mxu0
    %v154 = vadd.f32 %v127, %v153
    %v155 = vpop.f32.mrf.mxu0
    %156 = vdwg.mxu0
    %157 = vset.pattern.permute.xlu0 1
    %158 = vperm.xlu0 %157, %v114
    %v159 = vpop.permute.xlu0 %158
    %v162 = vunpack.c.l.s4 269488144
    %v163 = vunpack.c.0.s8 %v162
    %v164 = vperm.slane %v159, %v163
    %v165 = vperm.slane %v116, 1
    %v166 = vmul.f32 %v164, %v165
    %v167 = vadd.f32 %v154, %v166
    %168 = vset.pattern.permute.xlu0 2
    %169 = vperm.xlu0 %168, %v114
    %v170 = vpop.permute.xlu0 %169
    %v173 = vunpack.c.l.s4 269488144
    %v174 = vunpack.c.0.s8 %v173
    %v175 = vperm.slane %v170, %v174
    %v176 = vperm.slane %v116, 2
    %v177 = vmul.f32 %v175, %v176
    %v178 = vadd.f32 %v167, %v177
    %179 = vset.pattern.permute.xlu0 3
    %180 = vperm.xlu0 %179, %v114
    %v181 = vpop.permute.xlu0 %180
    %v184 = vunpack.c.l.s4 269488144
    %v185 = vunpack.c.0.s8 %v184
    %v186 = vperm.slane %v181, %v185
    %v187 = vperm.slane %v116, 3
    %v188 = vmul.f32 %v186, %v187
    %v189 = vadd.f32 %v178, %v188
    %v190 = vld [vmem:[%s6] sm:$0x1]
    %v192 = vperm.slane %v190, 0
    %v194 = vadd.f32 %v189, %v192
    %v195 = vtanh.pop %v194
    %v196 = vld [vmem:[#allocation8] sm:$0xf]
    %v197 = vld [vmem:[#allocation8 + $0x4] sm:$0xf]
    %v198 = vld [vmem:[#allocation8 + $0x8] sm:$0xf]
    %v199 = vld [vmem:[#allocation8 + $0xc] sm:$0xf]
    %v200 = vpack.c.bf16 %v195, %v195
    %v201 = vld [vmem:[%s7] sm:$0x1]
    %v203 = vperm.slane %v201, 0
    %v209 = vunpack.c.l.b16 %v196
    %v210 = vunpack.c.l.b16 %v197
    %v211 = vunpack.c.l.b16 %v198
    %v212 = vunpack.c.l.b16 %v199
    %v213 = vpack.c.b16 %v210, %v209
    %v214 = vpack.c.b16 %v212, %v211
    %v218 = vsel %vm140, %v200, 0
    %220 = vmatpush.bf16.msra.mxu0 0
    %221 = vmatpush.bf16.msra.mxu0 0
    %222 = vmatpush.bf16.msra.mxu0 0
    %223 = vmatpush.bf16.msra.mxu0 0
    %224 = vmatpush.bf16.msra.mxu0 0
    %225 = vmatpush.bf16.msra.mxu0 0
    %226 = vmatpush.bf16.msra.mxu0 %v214
    %227 = vmatpush.bf16.msra.mxu0 %v213
    %228 = vmatmul.bf16.gmra.mxu0 %v218
    %v229 = vpop.f32.mrf.mxu0
    %v230 = vadd.f32 %v203, %v229
    %v231 = vpop.f32.mrf.mxu0
    %232 = vdwg.mxu0
    %v233 = vtanh.pop %v230
    %v234 = vld [vmem:[#allocation10] sm:$0xf]
    %v235 = vld [vmem:[#allocation10 + $0x4] sm:$0xf]
    %v236 = vld [vmem:[#allocation10 + $0x8] sm:$0xf]
    %v237 = vld [vmem:[#allocation10 + $0xc] sm:$0xf]
    %v238 = vpack.c.bf16 %v233, %v233
    %v239 = vld [vmem:[%s8] sm:$0x1]
    %v241 = vperm.slane %v239, 0
    %v247 = vunpack.c.l.b16 %v234
    %v248 = vunpack.c.l.b16 %v235
    %v249 = vunpack.c.l.b16 %v236
    %v250 = vunpack.c.l.b16 %v237
    %v251 = vpack.c.b16 %v248, %v247
    %v252 = vpack.c.b16 %v250, %v249
    %v256 = vsel %vm140, %v238, 0
    %258 = vmatpush.bf16.msra.mxu0 0
    %259 = vmatpush.bf16.msra.mxu0 0
    %260 = vmatpush.bf16.msra.mxu0 0
    %261 = vmatpush.bf16.msra.mxu0 0
    %262 = vmatpush.bf16.msra.mxu0 0
    %263 = vmatpush.bf16.msra.mxu0 0
    %264 = vmatpush.bf16.msra.mxu0 %v252
    %265 = vmatpush.bf16.msra.mxu0 %v251
    %266 = vmatmul.bf16.gmra.mxu0 %v256
    %v267 = vpop.f32.mrf.mxu0
    %v268 = vadd.f32 %v241, %v267
    %v269 = vpop.f32.mrf.mxu0
    %270 = vdwg.mxu0
    %vm271 = vcmask 254976
    %272 = vst.msk [vmem:[#allocation11] sm:$0x3] %vm271, %v268
    // Predicated region
    $region58: #{tpu_custom_call.1} parent=1 // pred_check
      _
    $region59: #{tpu_custom_call.1} parent=1 // pred_check_branch
      %274 = sbr.rel (0) target = $region61
    $region60: #{tpu_custom_call.1} parent=1 // pred_region
      %276 = vsyncadd [#allocation4], 0
      %s278 = sshll.u32 [#allocation11], 4
      %s279 = int_to_ptr.vmem [resolvable:$true] %s278
      %s280 = sshll.u32 %s9, 4
      %s281 = int_to_ptr.hbm [resolvable:$true] %s280
      %283 = dma.vmem_to_hbm [thread:$0]  %s279, 32, %s281, [#allocation4]
    $region61: #{tpu_custom_call.1} parent=1 // pred_fallthru
      _
    // Predicated region
    $region62: #{tpu_custom_call.1} parent=1 // pred_check
      _
    $region63: #{tpu_custom_call.1} parent=1 // pred_check_branch
      %285 = sbr.rel (0) target = $region65
    $region64: #{tpu_custom_call.1} parent=1 // pred_region
      %287 = dma.done [#allocation4], 32
    $region65: #{tpu_custom_call.1} parent=1 // pred_fallthru
      _
    %288 = vsyncpa [#allocation3], 1
    %289 = vsyncpa [#allocation6], 1
    %290 = vsyncpa [#allocation9], 1
    %291 = vsyncpa [#allocation4], 1

</llo_original>
